<compile_context>
chip_gen: v7x
topology: tpu7x:2x2x1
jax: 0.10.0
libtpu: 0.0.40
codegen_flags: <defaults>
</compile_context>

<pallas_src>
import functools

import jax
import jax.numpy as jnp
from jax import lax
from jax.experimental import pallas as pl
from jax.experimental.pallas import tpu as pltpu


_NEG_BIG = -1.0e30   # finite "minus infinity": exp(_NEG_BIG - m) underflows to 0.


def _supinfonce_kernel(kq_blk_ref, flags_ref, q_ref, rowid_ref, qlab_ref,
                       kq_ref, tlab_ref, colid_ref, colbias_ref, out_ref,
                       m_scr, s_scr, num_scr, cnt_scr, *, has_pad):
    del kq_blk_ref                      # only consumed by the index_maps
    b = pl.program_id(0)                # query-row tile
    p = pl.program_id(1)                # 0: max / neg-sum pass, 1: positive pass
    j = pl.program_id(2)                # tile along N = B + Q
    nt = pl.num_programs(2)

    # ---- per row-tile init (first N tile of pass 0) --------------------------
    @pl.when(jnp.logical_and(p == 0, j == 0))
    def _init():
        m_scr[...] = jnp.full(m_scr.shape, _NEG_BIG, dtype=m_scr.dtype)
        s_scr[...] = jnp.zeros_like(s_scr)
        num_scr[...] = jnp.zeros_like(num_scr)
        cnt_scr[...] = jnp.zeros_like(cnt_scr)

    has_pos = flags_ref[b * nt + j] > 0

    # Pass 0 needs every tile; pass 1 only tiles that can contain a positive
    # (over-approximate flag is safe — exact positive mask applied below).
    @pl.when(jnp.logical_or(p == 0, has_pos))
    def _compute():
        # Operands are pre-normalized (1/temp folded into q) in the wrapper, so
        # the logits are just the MXU dots (NT form: contract feature axes).
        logits = lax.dot_general(
            q_ref[...], kq_ref[...],
            dimension_numbers=(((1,), (1,)), ((), ())),
            preferred_element_type=jnp.float32)                   # (TB, TN)
        if has_pad:
            # Precomputed -1e30 bias on padded columns: excluded from max and
            # contributes exactly 0 after exp.  Emitted only when padding exists.
            logits = logits + colbias_ref[...]

        off_diag = rowid_ref[...] != colid_ref[...]               # (TB, TN)
        pos = jnp.logical_and(qlab_ref[...] == tlab_ref[...], off_diag)

        @pl.when(p == 0)
        def _pass0():   # online row max + rescaled negative exp-sum
            m_prev = m_scr[...]
            m_new = jnp.maximum(m_prev, jnp.max(logits, axis=1, keepdims=True))
            e = jnp.exp(logits - m_new)
            neg = jnp.logical_and(off_diag, jnp.logical_not(pos))
            s_scr[...] = (jnp.exp(m_prev - m_new) * s_scr[...]
                          + jnp.sum(jnp.where(neg, e, 0.0), axis=1, keepdims=True))
            m_scr[...] = m_new

        @pl.when(p == 1)
        def _pass1():   # positive log-prob terms against final max / neg-sum
            shifted = logits - m_scr[...]
            u = jnp.log(jnp.exp(shifted) + s_scr[...] + 1e-6)
            num_scr[...] += jnp.sum(jnp.where(pos, shifted - u, 0.0),
                                    axis=1, keepdims=True)
            cnt_scr[...] += jnp.sum(jnp.where(pos, 1.0, 0.0),
                                    axis=1, keepdims=True)

    # ---- per row-tile finalize ------------------------------------------------
    @pl.when(jnp.logical_and(p == 1, j == nt - 1))
    def _finalize():
        den = jnp.maximum(cnt_scr[...], 1.0)
        out_ref[...] = jnp.broadcast_to(num_scr[...] / den, out_ref.shape)


def _round_up(x: int, m: int) -> int:
    return (x + m - 1) // m * m


def _l2_normalize(x, eps=1e-8):
    n = jnp.sqrt(jnp.sum(x * x, axis=-1, keepdims=True))
    return x / jnp.maximum(n, eps)


def _default_vmem_limit():
    try:
        cap = getattr(pltpu.get_tpu_info(), "vmem_capacity_bytes", None)
        if cap:
            return int(min(cap * 3 // 4, 96 * 1024 * 1024))   # v7x 64MiB-aware
    except Exception:
        pass
    return 48 * 1024 * 1024


def sup_info_nce(query, keys, queue, query_labels, queue_labels, temp=0.05, *,
                 block_b=128, block_n=1024, matmul_dtype=jnp.bfloat16,
                 vmem_limit_bytes=None):
    """Pallas TPU implementation of SupInfoNCE.forward; returns a scalar f32 loss."""
    query = jnp.asarray(query, jnp.float32)
    keys = jnp.asarray(keys, jnp.float32)
    queue = jnp.asarray(queue, jnp.float32)
    qlab = jnp.asarray(query_labels, jnp.int32)
    tlab = jnp.concatenate([qlab, jnp.asarray(queue_labels, jnp.int32)], axis=0)
    kq = jnp.concatenate([keys, queue], axis=0)

    B, D = query.shape
    N = kq.shape[0]

    TB = min(block_b, _round_up(B, 8))
    TN = min(block_n, _round_up(N, 128))
    B_pad = _round_up(B, TB)
    N_pad = _round_up(N, TN)
    D_pad = _round_up(D, 128)            # lane-dense feature axis
    nb, nt = B_pad // TB, N_pad // TN
    has_pad = N_pad != N

    # Pre-normalize once in the wrapper (per-vector eps clamp instead of the
    # reference's clamp on the norm product; identical for non-degenerate
    # embeddings) with 1/temp folded into the query, then store the streamed
    # operands in matmul_dtype (bf16 halves the dominant kq HBM stream).
    q_n = _l2_normalize(query) * (1.0 / float(temp))
    kq_n = _l2_normalize(kq)
    q_p = jnp.pad(q_n, ((0, B_pad - B), (0, D_pad - D))).astype(matmul_dtype)
    kq_p = jnp.pad(kq_n, ((0, N_pad - N), (0, D_pad - D))).astype(matmul_dtype)

    qlab_p = jnp.pad(qlab, (0, B_pad - B), constant_values=-1)
    tlab_p = jnp.pad(tlab, (0, N_pad - N), constant_values=-2)

    # Diagonal-exclusion ids: row i may only self-match key column i (< B).
    rowid = jnp.arange(B_pad, dtype=jnp.int32).reshape(B_pad, 1)
    coliota = jnp.arange(N_pad, dtype=jnp.int32)
    colid = jnp.where(coliota < B, coliota, -1).reshape(1, N_pad)
    # Additive bias masking padded columns out of the max / exp sums.
    colbias = jnp.where(coliota < N, 0.0, _NEG_BIG).astype(jnp.float32)
    colbias = colbias.reshape(1, N_pad)

    # Per (row-tile, N-tile) "any label match" flags, computed blockwise so the
    # full (B_pad, N_pad) boolean is never materialized (peak TB x N_pad).
    def _tile_flags(ql):                                        # ql: (TB,)
        eq = ql[:, None] == tlab_p[None, :]                     # (TB, N_pad)
        return jnp.any(eq.reshape(TB, nt, TN), axis=(0, 2))     # (nt,)
    flags = jax.lax.map(_tile_flags, qlab_p.reshape(nb, TB))    # (nb, nt) bool

    # kq block-index table: pass 0 walks every tile; pass 1 maps unflagged tiles
    # to the most recently used block (same block index on consecutive grid
    # steps => Pallas skips the DMA as well as the compute).
    idx = jnp.arange(nt, dtype=jnp.int32)
    pass0_blk = jnp.broadcast_to(idx, (nb, nt))
    cand = jnp.where(flags, idx[None, :], -1).astype(jnp.int32)
    pass1_blk = lax.cummax(cand, axis=1)
    pass1_blk = jnp.where(pass1_blk < 0, nt - 1, pass1_blk)     # pass 0 ends on nt-1
    kq_blk = jnp.stack([pass0_blk, pass1_blk], axis=0).reshape(-1).astype(jnp.int32)
    flags_i = flags.astype(jnp.int32).reshape(-1)

    def row_map(b, p, j, blk, flg):
        return (b, 0)

    def kq_map(b, p, j, blk, flg):
        return (blk[(p * nb + b) * nt + j], 0)

    def col_map(b, p, j, blk, flg):
        return (0, blk[(p * nb + b) * nt + j])

    kernel = functools.partial(_supinfonce_kernel, has_pad=has_pad)
    if vmem_limit_bytes is None:
        vmem_limit_bytes = _default_vmem_limit()

    per_row = pl.pallas_call(
        kernel,
        out_shape=jax.ShapeDtypeStruct((B_pad, 128), jnp.float32),
        grid_spec=pltpu.PrefetchScalarGridSpec(
            num_scalar_prefetch=2,
            grid=(nb, 2, nt),                    # (row tiles, pass, N tiles)
            in_specs=[
                pl.BlockSpec((TB, D_pad), row_map),   # normalized query / temp
                pl.BlockSpec((TB, 1), row_map),       # row ids
                pl.BlockSpec((TB, 1), row_map),       # query labels
                pl.BlockSpec((TN, D_pad), kq_map),    # normalized keys ++ queue
                pl.BlockSpec((1, TN), col_map),       # target labels
                pl.BlockSpec((1, TN), col_map),       # column ids (diag exclusion)
                pl.BlockSpec((1, TN), col_map),       # padded-column bias
            ],
            out_specs=pl.BlockSpec((TB, 128), row_map),
            scratch_shapes=[
                pltpu.VMEM((TB, 1), jnp.float32),   # running row max
                pltpu.VMEM((TB, 1), jnp.float32),   # running negative exp-sum
                pltpu.VMEM((TB, 1), jnp.float32),   # positive log-prob numerator
                pltpu.VMEM((TB, 1), jnp.float32),   # positive count
            ],
        ),
        compiler_params=pltpu.CompilerParams(
            dimension_semantics=("parallel", "arbitrary", "arbitrary"),
            vmem_limit_bytes=vmem_limit_bytes,
        ),
    )(kq_blk, flags_i, q_p, rowid, qlab_p.reshape(B_pad, 1), kq_p,
      tlab_p.reshape(1, N_pad), colid, colbias)

    return -jnp.mean(per_row[:B, 0])


def _reference(query, keys, queue, query_labels, queue_labels, temp=0.05):
    """Pure-JAX reference mirroring the PyTorch forward exactly."""
    def cos(a, b):
        dots = jnp.sum(a * b, axis=-1)
        na = jnp.linalg.norm(a, axis=-1)
        nb = jnp.linalg.norm(b, axis=-1)
        return dots / jnp.maximum(na * nb, 1e-8)

    sim_pos = cos(query[:, None, :], keys[None, :, :])
    sim_neg = cos(query[:, None, :], queue[None, :, :])
    logits = jnp.concatenate([sim_pos, sim_neg], axis=1) / temp
    logits = logits - jnp.max(logits, axis=1, keepdims=True)

    B = query_labels.shape[0]
    Q = queue_labels.shape[0]
    inv_diag = jnp.concatenate(
        [~jnp.eye(B, dtype=bool), jnp.ones((B, Q), dtype=bool)], axis=1)
    target_labels = jnp.concatenate([query_labels, queue_labels], axis=0)
    pos = (query_labels[:, None] == target_labels[None, :]) & inv_diag

    alignment = logits
    uniformity = jnp.exp(logits) * inv_diag
    uniformity = uniformity * pos + jnp.sum(
        uniformity * (~pos) * inv_diag, axis=1, keepdims=True)
    uniformity = jnp.log(uniformity + 1e-6)
    log_prob = alignment - uniformity
    log_prob = jnp.sum(pos * log_prob, axis=1, keepdims=True) / jnp.maximum(
        jnp.sum(pos, axis=1, keepdims=True).astype(jnp.float32), 1.0)
    return -jnp.mean(log_prob)


if __name__ == "__main__":
    key = jax.random.PRNGKey(0)
    k1, k2, k3, k4, k5, k6 = jax.random.split(key, 6)

    # --- small single-tile config (B=8, Q=16, D=32) ---------------------------
    B, Q, D = 8, 16, 32
    query = jax.random.normal(k1, (B, D), dtype=jnp.float32)
    keys = jax.random.normal(k2, (B, D), dtype=jnp.float32)
    queue = jax.random.normal(k3, (Q, D), dtype=jnp.float32)
    query_labels = jax.random.randint(k4, (B,), 0, 4, dtype=jnp.int32)
    queue_labels = jax.random.randint(k5, (Q,), 0, 4, dtype=jnp.int32)

    ref = _reference(query, keys, queue, query_labels, queue_labels, temp=0.05)

    # f32 parity mode: tight tolerance vs the reference.
    loss_f32 = jax.block_until_ready(
        sup_info_nce(query, keys, queue, query_labels, queue_labels, temp=0.05,
                     matmul_dtype=jnp.float32))
    assert jnp.isfinite(loss_f32), "f32 loss is not finite"
    assert jnp.allclose(loss_f32, ref, rtol=3e-4, atol=3e-4), (loss_f32, ref)

    # Default bf16 streaming mode: relaxed tolerance (cosine/temp amplifies
    # bf16 rounding of the operands).
    loss_bf16 = jax.block_until_ready(
        sup_info_nce(query, keys, queue, query_labels, queue_labels, temp=0.05))
    assert jnp.isfinite(loss_bf16), "bf16 loss is not finite"
    assert jnp.allclose(loss_bf16, ref, rtol=6e-2, atol=6e-2), (loss_bf16, ref)

    # --- multi-tile config exercising streaming, padding, the pass-1 compute
    # --- gate and the pass-1 DMA-skip remap ------------------------------------
    B2, Q2, D2 = 12, 300, 32
    kk = jax.random.split(k6, 6)
    query2 = jax.random.normal(kk[0], (B2, D2), dtype=jnp.float32)
    keys2 = jax.random.normal(kk[1], (B2, D2), dtype=jnp.float32)
    queue2 = jax.random.normal(kk[2], (Q2, D2), dtype=jnp.float32)
    qlab2 = jax.random.randint(kk[3], (B2,), 0, 4, dtype=jnp.int32)
    # First 260 queue labels never match any query label -> at least one whole
    # N tile has no positives, exercising the flag gate + DMA-skip remap.
    queue_lab2 = jnp.concatenate([
        jnp.full((260,), 7, dtype=jnp.int32),
        jax.random.randint(kk[4], (40,), 0, 4, dtype=jnp.int32)])

    ref2 = _reference(query2, keys2, queue2, qlab2, queue_lab2, temp=0.05)

    loss2_f32 = jax.block_until_ready(
        sup_info_nce(query2, keys2, queue2, qlab2, queue_lab2, temp=0.05,
                     block_b=8, block_n=128, matmul_dtype=jnp.float32))
    assert jnp.isfinite(loss2_f32), "loss2 (f32) is not finite"
    assert jnp.allclose(loss2_f32, ref2, rtol=3e-4, atol=3e-4), (loss2_f32, ref2)

    loss2_bf16 = jax.block_until_ready(
        sup_info_nce(query2, keys2, queue2, qlab2, queue_lab2, temp=0.05,
                     block_b=8, block_n=128))
    assert jnp.isfinite(loss2_bf16), "loss2 (bf16) is not finite"
    assert jnp.allclose(loss2_bf16, ref2, rtol=6e-2, atol=6e-2), (loss2_bf16, ref2)

    print("KERNEL_OK")
</pallas_src>

<mosaic_0001>
module attributes {stable_mosaic.version = 11 : i64} {
  func.func @_supinfonce_kernel(%arg0: i32, %arg1: i32, %arg2: i32, %arg3: memref<2xi32, #tpu.memory_space<smem>>, %arg4: memref<1xi32, #tpu.memory_space<smem>>, %arg5: memref<8x128xf32, #tpu.memory_space<vmem>>, %arg6: memref<8x1xi32, #tpu.memory_space<vmem>>, %arg7: memref<8x1xi32, #tpu.memory_space<vmem>>, %arg8: memref<128x128xf32, #tpu.memory_space<vmem>>, %arg9: memref<1x128xi32, #tpu.memory_space<vmem>>, %arg10: memref<1x128xi32, #tpu.memory_space<vmem>>, %arg11: memref<1x128xf32, #tpu.memory_space<vmem>>, %arg12: memref<8x128xf32, #tpu.memory_space<vmem>>, %arg13: memref<8x1xf32, #tpu.memory_space<vmem>>, %arg14: memref<8x1xf32, #tpu.memory_space<vmem>>, %arg15: memref<8x1xf32, #tpu.memory_space<vmem>>, %arg16: memref<8x1xf32, #tpu.memory_space<vmem>>) attributes {dimension_semantics = [#tpu.dimension_semantics<parallel>, #tpu.dimension_semantics<arbitrary>, #tpu.dimension_semantics<arbitrary>], iteration_bounds = array<i64: 1, 2, 1>, scalar_prefetch = 2 : i64, scratch_operands = 4 : i64, tpu.core_type = #tpu.core_type<tc>, window_params = [{transform_indices = @transform_0, window_bounds = array<i64: 8, 128>}, {transform_indices = @transform_1, window_bounds = array<i64: 8, 1>}, {transform_indices = @transform_2, window_bounds = array<i64: 8, 1>}, {transform_indices = @transform_3, window_bounds = array<i64: 128, 128>}, {transform_indices = @transform_4, window_bounds = array<i64: 1, 128>}, {transform_indices = @transform_5, window_bounds = array<i64: 1, 128>}, {transform_indices = @transform_6, window_bounds = array<i64: 1, 128>}, {transform_indices = @transform_7, window_bounds = array<i64: 8, 128>}]} {
    %c0_i32 = arith.constant 0 : i32
    %0 = arith.cmpi eq, %arg1, %c0_i32 : i32
    %c0_i32_0 = arith.constant 0 : i32
    %1 = arith.cmpi eq, %arg2, %c0_i32_0 : i32
    %2 = arith.andi %0, %1 : i1
    %3 = arith.extui %2 : i1 to i32
    %c0_i32_1 = arith.constant 0 : i32
    %4 = arith.cmpi ne, %3, %c0_i32_1 : i32
    scf.if %4 {
      %cst = arith.constant -1.000000e+30 : f32
      %19 = vector.broadcast %cst : f32 to vector<8x1xf32>
      %c0 = arith.constant 0 : index
      %c0_8 = arith.constant 0 : index
      %20 = vector.load %arg13[%c0, %c0_8] : memref<8x1xf32, #tpu.memory_space<vmem>>, vector<8x1xf32>
      tpu.vector_store %arg13[%c0, %c0_8], %19 {strides = array<i32>} : memref<8x1xf32, #tpu.memory_space<vmem>>, vector<8x1xf32>,
      %cst_9 = arith.constant 0.000000e+00 : f32
      %21 = vector.broadcast %cst_9 : f32 to vector<8x1xf32>
      %c0_10 = arith.constant 0 : index
      %c0_11 = arith.constant 0 : index
      %22 = vector.load %arg14[%c0_10, %c0_11] : memref<8x1xf32, #tpu.memory_space<vmem>>, vector<8x1xf32>
      tpu.vector_store %arg14[%c0_10, %c0_11], %21 {strides = array<i32>} : memref<8x1xf32, #tpu.memory_space<vmem>>, vector<8x1xf32>,
      %cst_12 = arith.constant 0.000000e+00 : f32
      %23 = vector.broadcast %cst_12 : f32 to vector<8x1xf32>
      %c0_13 = arith.constant 0 : index
      %c0_14 = arith.constant 0 : index
      %24 = vector.load %arg15[%c0_13, %c0_14] : memref<8x1xf32, #tpu.memory_space<vmem>>, vector<8x1xf32>
      tpu.vector_store %arg15[%c0_13, %c0_14], %23 {strides = array<i32>} : memref<8x1xf32, #tpu.memory_space<vmem>>, vector<8x1xf32>,
      %cst_15 = arith.constant 0.000000e+00 : f32
      %25 = vector.broadcast %cst_15 : f32 to vector<8x1xf32>
      %c0_16 = arith.constant 0 : index
      %c0_17 = arith.constant 0 : index
      %26 = vector.load %arg16[%c0_16, %c0_17] : memref<8x1xf32, #tpu.memory_space<vmem>>, vector<8x1xf32>
      tpu.vector_store %arg16[%c0_16, %c0_17], %25 {strides = array<i32>} : memref<8x1xf32, #tpu.memory_space<vmem>>, vector<8x1xf32>,
    } else {
    }
    %c1_i32 = arith.constant 1 : i32
    %5 = arith.muli %arg0, %c1_i32 : i32
    %6 = arith.addi %5, %arg2 : i32
    %7 = arith.index_cast %6 : i32 to index
    %8 = memref.load %arg4[%7] : memref<1xi32, #tpu.memory_space<smem>>
    %c0_i32_2 = arith.constant 0 : i32
    %9 = arith.cmpi sgt, %8, %c0_i32_2 : i32
    %c0_i32_3 = arith.constant 0 : i32
    %10 = arith.cmpi eq, %arg1, %c0_i32_3 : i32
    %11 = arith.ori %10, %9 : i1
    %12 = arith.extui %11 : i1 to i32
    %c0_i32_4 = arith.constant 0 : i32
    %13 = arith.cmpi ne, %12, %c0_i32_4 : i32
    scf.if %13 {
      %c0 = arith.constant 0 : index
      %c0_8 = arith.constant 0 : index
      %19 = vector.load %arg5[%c0, %c0_8] : memref<8x128xf32, #tpu.memory_space<vmem>>, vector<8x128xf32>
      %c0_9 = arith.constant 0 : index
      %c0_10 = arith.constant 0 : index
      %20 = vector.load %arg8[%c0_9, %c0_10] : memref<128x128xf32, #tpu.memory_space<vmem>>, vector<128x128xf32>
      %cst = arith.constant dense<0.000000e+00> : vector<8x128xf32>
      %21 = tpu.matmul %19, %20, %cst {dimension_numbers = #tpu.dot_dimension_numbers<[1], [1], [0], [0], [0, 0, 1, 0], [], []>} : vector<8x128xf32>, vector<128x128xf32>, vector<8x128xf32> -> vector<8x128xf32>
      %c0_11 = arith.constant 0 : index
      %c0_12 = arith.constant 0 : index
      %22 = vector.load %arg11[%c0_11, %c0_12] : memref<1x128xf32, #tpu.memory_space<vmem>>, vector<1x128xf32>
      %23 = vector.broadcast %22 : vector<1x128xf32> to vector<8x128xf32>
      %24 = arith.addf %21, %23 : vector<8x128xf32>
      %c0_13 = arith.constant 0 : index
      %c0_14 = arith.constant 0 : index
      %25 = vector.load %arg6[%c0_13, %c0_14] : memref<8x1xi32, #tpu.memory_space<vmem>>, vector<8x1xi32>
      %c0_15 = arith.constant 0 : index
      %c0_16 = arith.constant 0 : index
      %26 = vector.load %arg10[%c0_15, %c0_16] : memref<1x128xi32, #tpu.memory_space<vmem>>, vector<1x128xi32>
      %27 = vector.broadcast %25 : vector<8x1xi32> to vector<8x128xi32>
      %28 = vector.broadcast %26 : vector<1x128xi32> to vector<8x128xi32>
      %29 = arith.cmpi ne, %27, %28 : vector<8x128xi32>
      %c0_17 = arith.constant 0 : index
      %c0_18 = arith.constant 0 : index
      %30 = vector.load %arg7[%c0_17, %c0_18] : memref<8x1xi32, #tpu.memory_space<vmem>>, vector<8x1xi32>
      %c0_19 = arith.constant 0 : index
      %c0_20 = arith.constant 0 : index
      %31 = vector.load %arg9[%c0_19, %c0_20] : memref<1x128xi32, #tpu.memory_space<vmem>>, vector<1x128xi32>
      %32 = vector.broadcast %30 : vector<8x1xi32> to vector<8x128xi32>
      %33 = vector.broadcast %31 : vector<1x128xi32> to vector<8x128xi32>
      %34 = arith.cmpi eq, %32, %33 : vector<8x128xi32>
      %35 = arith.andi %34, %29 : vector<8x128xi1>
      %c0_i32_21 = arith.constant 0 : i32
      %36 = arith.cmpi eq, %arg1, %c0_i32_21 : i32
      %37 = arith.extui %36 : i1 to i32
      %c0_i32_22 = arith.constant 0 : i32
      %38 = arith.cmpi ne, %37, %c0_i32_22 : i32
      scf.if %38 {
        %c0_25 = arith.constant 0 : index
        %c0_26 = arith.constant 0 : index
        %42 = vector.load %arg13[%c0_25, %c0_26] : memref<8x1xf32, #tpu.memory_space<vmem>>, vector<8x1xf32>
        %cst_27 = arith.constant dense<0xFF800000> : vector<8xf32>
        %43 = vector.multi_reduction <maximumf>, %24, %cst_27 [1] : vector<8x128xf32> to vector<8xf32>
        %44 = vector.shape_cast %43 : vector<8xf32> to vector<8x1xf32>
        %45 = arith.maximumf %42, %44 : vector<8x1xf32>
        %46 = vector.broadcast %45 : vector<8x1xf32> to vector<8x128xf32>
        %47 = arith.subf %24, %46 : vector<8x128xf32>
        %48 = math.exp %47 : vector<8x128xf32>
        %cst_28 = arith.constant dense<true> : vector<8x128xi1>
        %49 = arith.xori %35, %cst_28 : vector<8x128xi1>
        %50 = arith.andi %29, %49 : vector<8x128xi1>
        %51 = arith.subf %42, %45 : vector<8x1xf32>
        %52 = math.exp %51 : vector<8x1xf32>
        %c0_29 = arith.constant 0 : index
        %c0_30 = arith.constant 0 : index
        %53 = vector.load %arg14[%c0_29, %c0_30] : memref<8x1xf32, #tpu.memory_space<vmem>>, vector<8x1xf32>
        %54 = arith.mulf %52, %53 : vector<8x1xf32>
        %cst_31 = arith.constant 0.000000e+00 : f32
        %55 = vector.broadcast %cst_31 : f32 to vector<8x128xf32>
        %56 = arith.select %50, %48, %55 : vector<8x128xi1>, vector<8x128xf32>
        %cst_32 = arith.constant dense<0.000000e+00> : vector<8xf32>
        %57 = vector.multi_reduction <add>, %56, %cst_32 [1] : vector<8x128xf32> to vector<8xf32>
        %58 = vector.shape_cast %57 : vector<8xf32> to vector<8x1xf32>
        %59 = arith.addf %54, %58 : vector<8x1xf32>
        %c0_33 = arith.constant 0 : index
        %c0_34 = arith.constant 0 : index
        %60 = vector.load %arg14[%c0_33, %c0_34] : memref<8x1xf32, #tpu.memory_space<vmem>>, vector<8x1xf32>
        tpu.vector_store %arg14[%c0_33, %c0_34], %59 {strides = array<i32>} : memref<8x1xf32, #tpu.memory_space<vmem>>, vector<8x1xf32>,
        %c0_35 = arith.constant 0 : index
        %c0_36 = arith.constant 0 : index
        %61 = vector.load %arg13[%c0_35, %c0_36] : memref<8x1xf32, #tpu.memory_space<vmem>>, vector<8x1xf32>
        tpu.vector_store %arg13[%c0_35, %c0_36], %45 {strides = array<i32>} : memref<8x1xf32, #tpu.memory_space<vmem>>, vector<8x1xf32>,
      } else {
      }
      %c1_i32_23 = arith.constant 1 : i32
      %39 = arith.cmpi eq, %arg1, %c1_i32_23 : i32
      %40 = arith.extui %39 : i1 to i32
      %c0_i32_24 = arith.constant 0 : i32
      %41 = arith.cmpi ne, %40, %c0_i32_24 : i32
      scf.if %41 {
        %c0_25 = arith.constant 0 : index
        %c0_26 = arith.constant 0 : index
        %42 = vector.load %arg13[%c0_25, %c0_26] : memref<8x1xf32, #tpu.memory_space<vmem>>, vector<8x1xf32>
        %43 = vector.broadcast %42 : vector<8x1xf32> to vector<8x128xf32>
        %44 = arith.subf %24, %43 : vector<8x128xf32>
        %45 = math.exp %44 : vector<8x128xf32>
        %c0_27 = arith.constant 0 : index
        %c0_28 = arith.constant 0 : index
        %46 = vector.load %arg14[%c0_27, %c0_28] : memref<8x1xf32, #tpu.memory_space<vmem>>, vector<8x1xf32>
        %47 = vector.broadcast %46 : vector<8x1xf32> to vector<8x128xf32>
        %48 = arith.addf %45, %47 : vector<8x128xf32>
        %cst_29 = arith.constant 9.99999997E-7 : f32
        %49 = vector.broadcast %cst_29 : f32 to vector<8x128xf32>
        %50 = arith.addf %48, %49 : vector<8x128xf32>
        %51 = math.log %50 : vector<8x128xf32>
        %c0_30 = arith.constant 0 : index
        %c0_31 = arith.constant 0 : index
        %52 = vector.load %arg15[%c0_30, %c0_31] : memref<8x1xf32, #tpu.memory_space<vmem>>, vector<8x1xf32>
        %53 = arith.subf %44, %51 : vector<8x128xf32>
        %cst_32 = arith.constant 0.000000e+00 : f32
        %54 = vector.broadcast %cst_32 : f32 to vector<8x128xf32>
        %55 = arith.select %35, %53, %54 : vector<8x128xi1>, vector<8x128xf32>
        %cst_33 = arith.constant dense<0.000000e+00> : vector<8xf32>
        %56 = vector.multi_reduction <add>, %55, %cst_33 [1] : vector<8x128xf32> to vector<8xf32>
        %57 = vector.shape_cast %56 : vector<8xf32> to vector<8x1xf32>
        %58 = arith.addf %52, %57 : vector<8x1xf32>
        %c0_34 = arith.constant 0 : index
        %c0_35 = arith.constant 0 : index
        %59 = vector.load %arg15[%c0_34, %c0_35] : memref<8x1xf32, #tpu.memory_space<vmem>>, vector<8x1xf32>
        tpu.vector_store %arg15[%c0_34, %c0_35], %58 {strides = array<i32>} : memref<8x1xf32, #tpu.memory_space<vmem>>, vector<8x1xf32>,
        %c0_36 = arith.constant 0 : index
        %c0_37 = arith.constant 0 : index
        %60 = vector.load %arg16[%c0_36, %c0_37] : memref<8x1xf32, #tpu.memory_space<vmem>>, vector<8x1xf32>
        %cst_38 = arith.constant 1.000000e+00 : f32
        %cst_39 = arith.constant 0.000000e+00 : f32
        %61 = vector.broadcast %cst_38 : f32 to vector<8x128xf32>
        %62 = vector.broadcast %cst_39 : f32 to vector<8x128xf32>
        %63 = arith.select %35, %61, %62 : vector<8x128xi1>, vector<8x128xf32>
        %cst_40 = arith.constant dense<0.000000e+00> : vector<8xf32>
        %64 = vector.multi_reduction <add>, %63, %cst_40 [1] : vector<8x128xf32> to vector<8xf32>
        %65 = vector.shape_cast %64 : vector<8xf32> to vector<8x1xf32>
        %66 = arith.addf %60, %65 : vector<8x1xf32>
        %c0_41 = arith.constant 0 : index
        %c0_42 = arith.constant 0 : index
        %67 = vector.load %arg16[%c0_41, %c0_42] : memref<8x1xf32, #tpu.memory_space<vmem>>, vector<8x1xf32>
        tpu.vector_store %arg16[%c0_41, %c0_42], %66 {strides = array<i32>} : memref<8x1xf32, #tpu.memory_space<vmem>>, vector<8x1xf32>,
      } else {
      }
    } else {
    }
    %c1_i32_5 = arith.constant 1 : i32
    %14 = arith.cmpi eq, %arg1, %c1_i32_5 : i32
    %c0_i32_6 = arith.constant 0 : i32
    %15 = arith.cmpi eq, %arg2, %c0_i32_6 : i32
    %16 = arith.andi %14, %15 : i1
    %17 = arith.extui %16 : i1 to i32
    %c0_i32_7 = arith.constant 0 : i32
    %18 = arith.cmpi ne, %17, %c0_i32_7 : i32
    scf.if %18 {
      %c0 = arith.constant 0 : index
      %c0_8 = arith.constant 0 : index
      %19 = vector.load %arg16[%c0, %c0_8] : memref<8x1xf32, #tpu.memory_space<vmem>>, vector<8x1xf32>
      %cst = arith.constant 1.000000e+00 : f32
      %20 = vector.broadcast %cst : f32 to vector<8x1xf32>
      %21 = arith.maximumf %19, %20 : vector<8x1xf32>
      %c0_9 = arith.constant 0 : index
      %c0_10 = arith.constant 0 : index
      %22 = vector.load %arg15[%c0_9, %c0_10] : memref<8x1xf32, #tpu.memory_space<vmem>>, vector<8x1xf32>
      %23 = arith.divf %22, %21 : vector<8x1xf32>
      %24 = vector.shape_cast %23 : vector<8x1xf32> to vector<8x1xf32>
      %25 = vector.broadcast %24 : vector<8x1xf32> to vector<8x128xf32>
      %c0_11 = arith.constant 0 : index
      %c0_12 = arith.constant 0 : index
      %26 = vector.load %arg12[%c0_11, %c0_12] : memref<8x128xf32, #tpu.memory_space<vmem>>, vector<8x128xf32>
      tpu.vector_store %arg12[%c0_11, %c0_12], %25 {strides = array<i32>} : memref<8x128xf32, #tpu.memory_space<vmem>>, vector<8x128xf32>,
    } else {
    }
    return
  }
  func.func @transform_0(%arg0: i32, %arg1: i32, %arg2: i32, %arg3: memref<2xi32, #tpu.memory_space<smem>>, %arg4: memref<1xi32, #tpu.memory_space<smem>>) -> (i32, i32) {
    %c0_i32 = arith.constant 0 : i32
    %c0_i32_0 = arith.constant 0 : i32
    return %arg0, %c0_i32 : i32, i32
  }
  func.func @transform_1(%arg0: i32, %arg1: i32, %arg2: i32, %arg3: memref<2xi32, #tpu.memory_space<smem>>, %arg4: memref<1xi32, #tpu.memory_space<smem>>) -> (i32, i32) {
    %c0_i32 = arith.constant 0 : i32
    %c0_i32_0 = arith.constant 0 : i32
    return %arg0, %c0_i32 : i32, i32
  }
  func.func @transform_2(%arg0: i32, %arg1: i32, %arg2: i32, %arg3: memref<2xi32, #tpu.memory_space<smem>>, %arg4: memref<1xi32, #tpu.memory_space<smem>>) -> (i32, i32) {
    %c0_i32 = arith.constant 0 : i32
    %c0_i32_0 = arith.constant 0 : i32
    return %arg0, %c0_i32 : i32, i32
  }
  func.func @transform_3(%arg0: i32, %arg1: i32, %arg2: i32, %arg3: memref<2xi32, #tpu.memory_space<smem>>, %arg4: memref<1xi32, #tpu.memory_space<smem>>) -> (i32, i32) {
    %c1_i32 = arith.constant 1 : i32
    %0 = arith.muli %arg1, %c1_i32 : i32
    %1 = arith.addi %0, %arg0 : i32
    %c1_i32_0 = arith.constant 1 : i32
    %2 = arith.muli %1, %c1_i32_0 : i32
    %3 = arith.addi %2, %arg2 : i32
    %4 = arith.index_cast %3 : i32 to index
    %5 = memref.load %arg3[%4] : memref<2xi32, #tpu.memory_space<smem>>
    %c0_i32 = arith.constant 0 : i32
    %c0_i32_1 = arith.constant 0 : i32
    return %5, %c0_i32 : i32, i32
  }
  func.func @transform_4(%arg0: i32, %arg1: i32, %arg2: i32, %arg3: memref<2xi32, #tpu.memory_space<smem>>, %arg4: memref<1xi32, #tpu.memory_space<smem>>) -> (i32, i32) {
    %c1_i32 = arith.constant 1 : i32
    %0 = arith.muli %arg1, %c1_i32 : i32
    %1 = arith.addi %0, %arg0 : i32
    %c1_i32_0 = arith.constant 1 : i32
    %2 = arith.muli %1, %c1_i32_0 : i32
    %3 = arith.addi %2, %arg2 : i32
    %4 = arith.index_cast %3 : i32 to index
    %5 = memref.load %arg3[%4] : memref<2xi32, #tpu.memory_space<smem>>
    %c0_i32 = arith.constant 0 : i32
    %c0_i32_1 = arith.constant 0 : i32
    return %c0_i32, %5 : i32, i32
  }
  func.func @transform_5(%arg0: i32, %arg1: i32, %arg2: i32, %arg3: memref<2xi32, #tpu.memory_space<smem>>, %arg4: memref<1xi32, #tpu.memory_space<smem>>) -> (i32, i32) {
    %c1_i32 = arith.constant 1 : i32
    %0 = arith.muli %arg1, %c1_i32 : i32
    %1 = arith.addi %0, %arg0 : i32
    %c1_i32_0 = arith.constant 1 : i32
    %2 = arith.muli %1, %c1_i32_0 : i32
    %3 = arith.addi %2, %arg2 : i32
    %4 = arith.index_cast %3 : i32 to index
    %5 = memref.load %arg3[%4] : memref<2xi32, #tpu.memory_space<smem>>
    %c0_i32 = arith.constant 0 : i32
    %c0_i32_1 = arith.constant 0 : i32
    return %c0_i32, %5 : i32, i32
  }
  func.func @transform_6(%arg0: i32, %arg1: i32, %arg2: i32, %arg3: memref<2xi32, #tpu.memory_space<smem>>, %arg4: memref<1xi32, #tpu.memory_space<smem>>) -> (i32, i32) {
    %c1_i32 = arith.constant 1 : i32
    %0 = arith.muli %arg1, %c1_i32 : i32
    %1 = arith.addi %0, %arg0 : i32
    %c1_i32_0 = arith.constant 1 : i32
    %2 = arith.muli %1, %c1_i32_0 : i32
    %3 = arith.addi %2, %arg2 : i32
    %4 = arith.index_cast %3 : i32 to index
    %5 = memref.load %arg3[%4] : memref<2xi32, #tpu.memory_space<smem>>
    %c0_i32 = arith.constant 0 : i32
    %c0_i32_1 = arith.constant 0 : i32
    return %c0_i32, %5 : i32, i32
  }
  func.func @transform_7(%arg0: i32, %arg1: i32, %arg2: i32, %arg3: memref<2xi32, #tpu.memory_space<smem>>, %arg4: memref<1xi32, #tpu.memory_space<smem>>) -> (i32, i32) {
    %c0_i32 = arith.constant 0 : i32
    %c0_i32_0 = arith.constant 0 : i32
    return %arg0, %c0_i32 : i32, i32
  }
}

</mosaic_0001>

<llo_original>
// kernel: tpu_custom_call.1
$region0: #{tpu_custom_call.1}
  #allocation0 [shape = 'u32[]', space=smem, size = 0x4, offset = 0x4, fixed_abs, tag = 'smem constant byte address 0x4 - core index']
  #allocation1 [shape = 'u32[144,128]{1,0:T(1,128)}', space=vmem, size = 0x12000, scoped, tag = 'internal scratch']
  #allocation2 [shape = 'f32[8,1]{1,0:T(8,128)}', space=vmem, size = 0x1000, scoped, tag = 'scratch operand']
  #allocation3 [shape = 'f32[8,1]{1,0:T(8,128)}', space=vmem, size = 0x1000, scoped, tag = 'scratch operand']
  #allocation4 [shape = 'f32[8,1]{1,0:T(8,128)}', space=vmem, size = 0x1000, scoped, tag = 'scratch operand']
  #allocation5 [shape = 'f32[8,1]{1,0:T(8,128)}', space=vmem, size = 0x1000, scoped, tag = 'scratch operand']
  #allocation6 [shape = 's32[1]{0}', space=sflag, size = 0x4, scoped, tag = 'scoped memory for tpu_custom_call.1']
  #allocation7 [shape = 'u8[512]{0}', space=smem, size = 0x200, scoped, tag = 'prefetched SMEM operand 0']
  #allocation8 [shape = 's32[1]{0:T(128)S(6)}', space=smem, size = 0x200, scoped, tag = 'prefetched SMEM operand 1']
  %s0 = inlined_call_operand.vmem [shape: s32[2], index: 0, kind: input, shape index: {}]
  %s1 = inlined_call_operand.<no memory space> [shape: s32[1], index: 1, kind: input, shape index: {}]
  %s2 = inlined_call_operand.vmem [shape: f32[8,128], index: 2, kind: input, shape index: {}]
  %s3 = inlined_call_operand.vmem [shape: s32[8,1], index: 3, kind: input, shape index: {}]
  %s4 = inlined_call_operand.vmem [shape: s32[8,1], index: 4, kind: input, shape index: {}]
  %s5 = inlined_call_operand.hbm [shape: f32[128,128], index: 5, kind: input, shape index: {}]
  %s6 = inlined_call_operand.vmem [shape: s32[1,128], index: 6, kind: input, shape index: {}]
  %s7 = inlined_call_operand.vmem [shape: s32[1,128], index: 7, kind: input, shape index: {}]
  %s8 = inlined_call_operand.vmem [shape: f32[1,128], index: 8, kind: input, shape index: {}]
  %s9 = inlined_call_operand.hbm [shape: f32[8,128], index: 9, kind: output, shape index: {}]
  %s10 = sld [smem:[#allocation0]]
  $region85: #{tpu_custom_call.1} parent=0
    _
  %s12 = ssub.s32 1, %s10
  %s13 = scalar_select 0, %s12, %s10
  %s14 = sshll.u32 %s0, 4
  %s15 = int_to_ptr.vmem [resolvable:$true] %s14
  %17 = dma.vmem_to_smem %s15, 16, [#allocation7], [#allocation6]
  %18 = sst [smem:[#allocation8]] %s1
  %19 = dma.done [#allocation6], 16
  %20 = sfence
  $region1: #{tpu_custom_call.1} parent=0
    #allocation9 [shape = 'u8[131072]{0}', space=vmem, size = 0x20000, scoped, tag = 'input window, operand 5']
    #allocation10 [shape = 's32[2]{0}', space=sflag, size = 0x8, scoped, tag = 'scoped memory for tpu_custom_call.1']
    #allocation11 [shape = 's32[2]{0}', space=sflag, size = 0x8, scoped, tag = 'scoped memory for tpu_custom_call.1']
    #allocation12 [shape = 'u8[4096]{0}', space=vmem, size = 0x1000, scoped, tag = 'output window, operand 0, single buffered']
    %21 = vsyncpa [#allocation10], 0
    %s22 = scalar_lea.sflag [#allocation10], 1
    %23 = vsyncpa %s22, 0
    %24 = vsyncpa [#allocation11], 0
    loop: start=0, step=1, limit=4
    $region2: #{tpu_custom_call.1} parent=1 // loop_pre_header
      _
    $region3: #{tpu_custom_call.1} parent=1 // loop_header
      %s26 = sphi 0, %s30
      %p27 = scmp.ge.s32.totalorder %s26, 4
      %s33 = sphi 0, %s52
      %s34 = sphi 0, %s48
      %s35 = sphi 0, %s44
      %s36 = sphi 0, %s33
      %s37 = sphi 0, %s34
      %s38 = sphi 0, %s35
      %s39 = sphi 0, %s36
      %s40 = sphi 0, %s37
      %s41 = sphi 0, %s38
      %s55 = sphi 0, %s57
      %s58 = sphi 0, %s55
      %s59 = sphi 0, %s58
      %s75 = sphi 0, %s59
      %s81 = sphi 0, %s83
      %s84 = sphi 0, %s81
      %s85 = sphi 0, %s84
      %s101 = sphi 0, %s85
      %s107 = sphi 0, %s109
      %s110 = sphi 0, %s107
      %s111 = sphi 0, %s110
      %s127 = sphi 0, %s111
      %s139 = sphi 0, %s141
      %s142 = sphi 0, %s139
      %s143 = sphi 0, %s142
      %s159 = sphi 0, %s143
      %s171 = sphi 0, %s173
      %s174 = sphi 0, %s171
      %s175 = sphi 0, %s174
      %s191 = sphi 0, %s175
      %s203 = sphi 0, %s205
      %s206 = sphi 0, %s203
      %s207 = sphi 0, %s206
      %s223 = sphi 0, %s207
      %s235 = sphi 0, %s237
      %s238 = sphi 0, %s235
      %s239 = sphi 0, %s238
      %s255 = sphi 0, %s239
      %s261 = sphi 0, %s263
      %s264 = sphi 0, %s261
      %s265 = sphi 0, %s264
      %s281 = sphi 0, %s265
    $region4: #{tpu_custom_call.1} parent=1 // loop_header_branch
      %29 = sbr.rel (%p27) target = $region8
    $region5: #{tpu_custom_call.1} parent=1 // loop_body
      %s31 = ssub.s32 %s26, 1
      %s32 = ssub.s32 %s26, 2
      %s42 = sadd.s32 1, %s35
      %p43 = scmp.ge.s32.totalorder %s42, 1
      %s44 = scalar_select %p43, 0, %s42
      %s45 = sadd.s32 1, %s34
      %s46 = scalar_select %p43, %s45, %s34
      %p47 = scmp.ge.s32.totalorder %s46, 2
      %s48 = scalar_select %p47, 0, %s46
      %s49 = sadd.s32 1, %s33
      %s50 = scalar_select %p47, %s49, %s33
      %p51 = scmp.ge.s32.totalorder %s50, 1
      %s52 = scalar_select %p51, 0, %s50
      %s53 = ssub.s32 %s33, %s52
      %p54 = scmp.eq.s32.totalorder %s53, 0
      %s56 = sadd.s32 %s55, 1
      %s57 = scalar_select %p54, %s55, %s56
      %p60 = pneg %p54
      %p61 = scmp.eq.s32.totalorder %s26, 1
      %p62 = por %p60, %p61
      %p63 = scmp.ne.s32.totalorder %s55, %s58
      %p64 = scmp.eq.s32.totalorder %s26, 0
      %p65 = por %p63, %p64
      %p66 = scmp.ne.s32.totalorder %s55, %s58
      %p67 = scmp.eq.s32.totalorder %s31, 1
      %p68 = por %p66, %p67
      %p69 = scmp.ne.s32.totalorder %s58, %s59
      %p70 = scmp.eq.s32.totalorder %s31, 0
      %p71 = por %p69, %p70
      %p72 = scmp.ne.s32.totalorder %s58, %s59
      %p73 = scmp.eq.s32.totalorder %s32, 1
      %p74 = por %p72, %p73
      %p76 = scmp.ne.s32.totalorder %s59, %s75
      %p77 = scmp.eq.s32.totalorder %s32, 0
      %p78 = por %p76, %p77
      %s79 = ssub.s32 %s33, %s52
      %p80 = scmp.eq.s32.totalorder %s79, 0
      %s82 = sadd.s32 %s81, 1
      %s83 = scalar_select %p80, %s81, %s82
      %p86 = pneg %p80
      %p87 = scmp.eq.s32.totalorder %s26, 1
      %p88 = por %p86, %p87
      %p89 = scmp.ne.s32.totalorder %s81, %s84
      %p90 = scmp.eq.s32.totalorder %s26, 0
      %p91 = por %p89, %p90
      %p92 = scmp.ne.s32.totalorder %s81, %s84
      %p93 = scmp.eq.s32.totalorder %s31, 1
      %p94 = por %p92, %p93
      %p95 = scmp.ne.s32.totalorder %s84, %s85
      %p96 = scmp.eq.s32.totalorder %s31, 0
      %p97 = por %p95, %p96
      %p98 = scmp.ne.s32.totalorder %s84, %s85
      %p99 = scmp.eq.s32.totalorder %s32, 1
      %p100 = por %p98, %p99
      %p102 = scmp.ne.s32.totalorder %s85, %s101
      %p103 = scmp.eq.s32.totalorder %s32, 0
      %p104 = por %p102, %p103
      %s105 = ssub.s32 %s33, %s52
      %p106 = scmp.eq.s32.totalorder %s105, 0
      %s108 = sadd.s32 %s107, 1
      %s109 = scalar_select %p106, %s107, %s108
      %p112 = pneg %p106
      %p113 = scmp.eq.s32.totalorder %s26, 1
      %p114 = por %p112, %p113
      %p115 = scmp.ne.s32.totalorder %s107, %s110
      %p116 = scmp.eq.s32.totalorder %s26, 0
      %p117 = por %p115, %p116
      %p118 = scmp.ne.s32.totalorder %s107, %s110
      %p119 = scmp.eq.s32.totalorder %s31, 1
      %p120 = por %p118, %p119
      %p121 = scmp.ne.s32.totalorder %s110, %s111
      %p122 = scmp.eq.s32.totalorder %s31, 0
      %p123 = por %p121, %p122
      %p124 = scmp.ne.s32.totalorder %s110, %s111
      %p125 = scmp.eq.s32.totalorder %s32, 1
      %p126 = por %p124, %p125
      %p128 = scmp.ne.s32.totalorder %s111, %s127
      %p129 = scmp.eq.s32.totalorder %s32, 0
      %p130 = por %p128, %p129
      %s131 = sadd.s32 %s34, %s33
      %s132 = sadd.s32 %s131, %s35
      %s133 = sld [smem:[#allocation7 + %s132]]
      %s134 = sadd.s32 %s48, %s52
      %s135 = sadd.s32 %s134, %s44
      %s136 = sld [smem:[#allocation7 + %s135]]
      %s137 = ssub.s32 %s133, %s136
      %p138 = scmp.eq.s32.totalorder %s137, 0
      %s140 = sadd.s32 %s139, 1
      %s141 = scalar_select %p138, %s139, %s140
      %p144 = pneg %p138
      %p145 = scmp.eq.s32.totalorder %s26, 1
      %p146 = por %p144, %p145
      %p147 = scmp.ne.s32.totalorder %s139, %s142
      %p148 = scmp.eq.s32.totalorder %s26, 0
      %p149 = por %p147, %p148
      %p150 = scmp.ne.s32.totalorder %s139, %s142
      %p151 = scmp.eq.s32.totalorder %s31, 1
      %p152 = por %p150, %p151
      %p153 = scmp.ne.s32.totalorder %s142, %s143
      %p154 = scmp.eq.s32.totalorder %s31, 0
      %p155 = por %p153, %p154
      %p156 = scmp.ne.s32.totalorder %s142, %s143
      %p157 = scmp.eq.s32.totalorder %s32, 1
      %p158 = por %p156, %p157
      %p160 = scmp.ne.s32.totalorder %s143, %s159
      %p161 = scmp.eq.s32.totalorder %s32, 0
      %p162 = por %p160, %p161
      %s163 = sadd.s32 %s34, %s33
      %s164 = sadd.s32 %s163, %s35
      %s165 = sld [smem:[#allocation7 + %s164]]
      %s166 = sadd.s32 %s48, %s52
      %s167 = sadd.s32 %s166, %s44
      %s168 = sld [smem:[#allocation7 + %s167]]
      %s169 = ssub.s32 %s165, %s168
      %p170 = scmp.eq.s32.totalorder %s169, 0
      %s172 = sadd.s32 %s171, 1
      %s173 = scalar_select %p170, %s171, %s172
      %p176 = pneg %p170
      %p177 = scmp.eq.s32.totalorder %s26, 1
      %p178 = por %p176, %p177
      %p179 = scmp.ne.s32.totalorder %s171, %s174
      %p180 = scmp.eq.s32.totalorder %s26, 0
      %p181 = por %p179, %p180
      %p182 = scmp.ne.s32.totalorder %s171, %s174
      %p183 = scmp.eq.s32.totalorder %s31, 1
      %p184 = por %p182, %p183
      %p185 = scmp.ne.s32.totalorder %s174, %s175
      %p186 = scmp.eq.s32.totalorder %s31, 0
      %p187 = por %p185, %p186
      %p188 = scmp.ne.s32.totalorder %s174, %s175
      %p189 = scmp.eq.s32.totalorder %s32, 1
      %p190 = por %p188, %p189
      %p192 = scmp.ne.s32.totalorder %s175, %s191
      %p193 = scmp.eq.s32.totalorder %s32, 0
      %p194 = por %p192, %p193
      %s195 = sadd.s32 %s34, %s33
      %s196 = sadd.s32 %s195, %s35
      %s197 = sld [smem:[#allocation7 + %s196]]
      %s198 = sadd.s32 %s48, %s52
      %s199 = sadd.s32 %s198, %s44
      %s200 = sld [smem:[#allocation7 + %s199]]
      %s201 = ssub.s32 %s197, %s200
      %p202 = scmp.eq.s32.totalorder %s201, 0
      %s204 = sadd.s32 %s203, 1
      %s205 = scalar_select %p202, %s203, %s204
      %p208 = pneg %p202
      %p209 = scmp.eq.s32.totalorder %s26, 1
      %p210 = por %p208, %p209
      %p211 = scmp.ne.s32.totalorder %s203, %s206
      %p212 = scmp.eq.s32.totalorder %s26, 0
      %p213 = por %p211, %p212
      %p214 = scmp.ne.s32.totalorder %s203, %s206
      %p215 = scmp.eq.s32.totalorder %s31, 1
      %p216 = por %p214, %p215
      %p217 = scmp.ne.s32.totalorder %s206, %s207
      %p218 = scmp.eq.s32.totalorder %s31, 0
      %p219 = por %p217, %p218
      %p220 = scmp.ne.s32.totalorder %s206, %s207
      %p221 = scmp.eq.s32.totalorder %s32, 1
      %p222 = por %p220, %p221
      %p224 = scmp.ne.s32.totalorder %s207, %s223
      %p225 = scmp.eq.s32.totalorder %s32, 0
      %p226 = por %p224, %p225
      %s227 = sadd.s32 %s34, %s33
      %s228 = sadd.s32 %s227, %s35
      %s229 = sld [smem:[#allocation7 + %s228]]
      %s230 = sadd.s32 %s48, %s52
      %s231 = sadd.s32 %s230, %s44
      %s232 = sld [smem:[#allocation7 + %s231]]
      %s233 = ssub.s32 %s229, %s232
      %p234 = scmp.eq.s32.totalorder %s233, 0
      %s236 = sadd.s32 %s235, 1
      %s237 = scalar_select %p234, %s235, %s236
      %p240 = pneg %p234
      %p241 = scmp.eq.s32.totalorder %s26, 1
      %p242 = por %p240, %p241
      %p243 = scmp.ne.s32.totalorder %s235, %s238
      %p244 = scmp.eq.s32.totalorder %s26, 0
      %p245 = por %p243, %p244
      %p246 = scmp.ne.s32.totalorder %s235, %s238
      %p247 = scmp.eq.s32.totalorder %s31, 1
      %p248 = por %p246, %p247
      %p249 = scmp.ne.s32.totalorder %s238, %s239
      %p250 = scmp.eq.s32.totalorder %s31, 0
      %p251 = por %p249, %p250
      %p252 = scmp.ne.s32.totalorder %s238, %s239
      %p253 = scmp.eq.s32.totalorder %s32, 1
      %p254 = por %p252, %p253
      %p256 = scmp.ne.s32.totalorder %s239, %s255
      %p257 = scmp.eq.s32.totalorder %s32, 0
      %p258 = por %p256, %p257
      %s259 = ssub.s32 %s33, %s52
      %p260 = scmp.eq.s32.totalorder %s259, 0
      %s262 = sadd.s32 %s261, 1
      %s263 = scalar_select %p260, %s261, %s262
      %p266 = pneg %p260
      %p267 = scmp.eq.s32.totalorder %s26, 1
      %p268 = por %p266, %p267
      %p269 = scmp.ne.s32.totalorder %s261, %s264
      %p270 = scmp.eq.s32.totalorder %s26, 0
      %p271 = por %p269, %p270
      %p272 = scmp.ne.s32.totalorder %s261, %s264
      %p273 = scmp.eq.s32.totalorder %s31, 1
      %p274 = por %p272, %p273
      %p275 = scmp.ne.s32.totalorder %s264, %s265
      %p276 = scmp.eq.s32.totalorder %s31, 0
      %p277 = por %p275, %p276
      %p278 = scmp.ne.s32.totalorder %s264, %s265
      %p279 = scmp.eq.s32.totalorder %s32, 1
      %p280 = por %p278, %p279
      %p282 = scmp.ne.s32.totalorder %s265, %s281
      %p283 = scmp.eq.s32.totalorder %s32, 0
      %p284 = por %p282, %p283
      %p285 = scmp.le.s32.totalorder 1, %s26
      %p286 = scmp.lt.s32.totalorder %s26, 3
      %p287 = pnand %p285, %p286
      %p288 = pneg %p287
      // Predicated region
      $region9: #{tpu_custom_call.1} parent=5 // pred_check
        _
      $region10: #{tpu_custom_call.1} parent=5 // pred_check_branch
        %290 = sbr.rel (%p287) target = $region12
      $region11: #{tpu_custom_call.1} parent=5 // pred_region
        %s291 = ssub.s32 %s26, 1
        // Predicated region
        $region13: #{tpu_custom_call.1} parent=11 // pred_check
          %p292 = pneg %p71
        $region14: #{tpu_custom_call.1} parent=11 // pred_check_branch
          %294 = sbr.rel (%p292) target = $region16
        $region15: #{tpu_custom_call.1} parent=11 // pred_region
          %p295 = scmp.lt.s32.totalorder %s36, 0
          %s296 = scalar_select %p295, %s36, 0
          %s297 = smul.addr %s296, 8
          %s298 = scalar_lea.vmem %s2, %s297
        $region16: #{tpu_custom_call.1} parent=11 // pred_fallthru
          _
        // Predicated region
        $region17: #{tpu_custom_call.1} parent=11 // pred_check
          %p299 = pneg %p97
        $region18: #{tpu_custom_call.1} parent=11 // pred_check_branch
          %301 = sbr.rel (%p299) target = $region20
        $region19: #{tpu_custom_call.1} parent=11 // pred_region
          %p302 = scmp.lt.s32.totalorder %s36, 0
          %s303 = scalar_select %p302, %s36, 0
          %s304 = smul.addr %s303, 8
          %s305 = scalar_lea.vmem %s3, %s304
        $region20: #{tpu_custom_call.1} parent=11 // pred_fallthru
          _
        // Predicated region
        $region21: #{tpu_custom_call.1} parent=11 // pred_check
          %p306 = pneg %p123
        $region22: #{tpu_custom_call.1} parent=11 // pred_check_branch
          %308 = sbr.rel (%p306) target = $region24
        $region23: #{tpu_custom_call.1} parent=11 // pred_region
          %p309 = scmp.lt.s32.totalorder %s36, 0
          %s310 = scalar_select %p309, %s36, 0
          %s311 = smul.addr %s310, 8
          %s312 = scalar_lea.vmem %s4, %s311
        $region24: #{tpu_custom_call.1} parent=11 // pred_fallthru
          _
      $region12: #{tpu_custom_call.1} parent=5 // pred_fallthru
        _
      %p313 = scmp.lt.s32.totalorder %s26, 2
      // Predicated region
      $region25: #{tpu_custom_call.1} parent=5 // pred_check
        %p314 = pneg %p313
      $region26: #{tpu_custom_call.1} parent=5 // pred_check_branch
        %316 = sbr.rel (%p314) target = $region28
      $region27: #{tpu_custom_call.1} parent=5 // pred_region
        // Predicated region
        $region29: #{tpu_custom_call.1} parent=27 // pred_check
          %p317 = pneg %p149
        $region30: #{tpu_custom_call.1} parent=27 // pred_check_branch
          %319 = sbr.rel (%p317) target = $region32
        $region31: #{tpu_custom_call.1} parent=27 // pred_region
          %s320 = sand.u32 %s139, 1
          %s321 = scalar_lea.sflag [#allocation10], %s320
          %s322 = sand.u32 %s139, 1
          %s323 = smul.addr %s322, 128
          %s324 = scalar_lea.vmem [#allocation9], %s323
          %s325 = sadd.s32 %s34, %s33
          %s326 = sadd.s32 %s325, %s35
          %s327 = sld [smem:[#allocation7 + %s326]]
          %s328 = smul.u32 16, %s327
          %s330 = ssub.s32 2048, 2048
          %331 = vsyncadd %s321, %s330
          %s332 = smul.addr %s328, 128
          %s333 = scalar_lea.hbm %s5, %s332
          %s334 = sshll.u32 %s324, 4
          %s335 = int_to_ptr.vmem [resolvable:$true] %s334
          %340 = dma.hbm_to_vmem [thread:$0]  %s333, 2048, %s335, %s321, 128, 128, 8
        $region32: #{tpu_custom_call.1} parent=27 // pred_fallthru
          _
        // Predicated region
        $region33: #{tpu_custom_call.1} parent=27 // pred_check
          %p341 = pneg %p181
        $region34: #{tpu_custom_call.1} parent=27 // pred_check_branch
          %343 = sbr.rel (%p341) target = $region36
        $region35: #{tpu_custom_call.1} parent=27 // pred_region
          %s344 = sadd.s32 %s34, %s33
          %s345 = sadd.s32 %s344, %s35
          %s346 = sld [smem:[#allocation7 + %s345]]
          %p347 = scmp.lt.s32.totalorder %s346, 0
          %s348 = scalar_select %p347, %s346, 0
          %s349 = scalar_lea.vmem %s6, %s348
          %s350 = sadd.s32 %s34, %s33
          %s351 = sadd.s32 %s350, %s35
          %s352 = sld [smem:[#allocation7 + %s351]]
        $region36: #{tpu_custom_call.1} parent=27 // pred_fallthru
          _
        // Predicated region
        $region37: #{tpu_custom_call.1} parent=27 // pred_check
          %p353 = pneg %p213
        $region38: #{tpu_custom_call.1} parent=27 // pred_check_branch
          %355 = sbr.rel (%p353) target = $region40
        $region39: #{tpu_custom_call.1} parent=27 // pred_region
          %s356 = sadd.s32 %s34, %s33
          %s357 = sadd.s32 %s356, %s35
          %s358 = sld [smem:[#allocation7 + %s357]]
          %p359 = scmp.lt.s32.totalorder %s358, 0
          %s360 = scalar_select %p359, %s358, 0
          %s361 = scalar_lea.vmem %s7, %s360
          %s362 = sadd.s32 %s34, %s33
          %s363 = sadd.s32 %s362, %s35
          %s364 = sld [smem:[#allocation7 + %s363]]
        $region40: #{tpu_custom_call.1} parent=27 // pred_fallthru
          _
        // Predicated region
        $region41: #{tpu_custom_call.1} parent=27 // pred_check
          %p365 = pneg %p245
        $region42: #{tpu_custom_call.1} parent=27 // pred_check_branch
          %367 = sbr.rel (%p365) target = $region44
        $region43: #{tpu_custom_call.1} parent=27 // pred_region
          %s368 = sadd.s32 %s34, %s33
          %s369 = sadd.s32 %s368, %s35
          %s370 = sld [smem:[#allocation7 + %s369]]
          %p371 = scmp.lt.s32.totalorder %s370, 0
          %s372 = scalar_select %p371, %s370, 0
          %s373 = scalar_lea.vmem %s8, %s372
          %s374 = sadd.s32 %s34, %s33
          %s375 = sadd.s32 %s374, %s35
          %s376 = sld [smem:[#allocation7 + %s375]]
        $region44: #{tpu_custom_call.1} parent=27 // pred_fallthru
          _
      $region28: #{tpu_custom_call.1} parent=5 // pred_fallthru
        _
      %p377 = scmp.le.s32.totalorder 1, %s26
      %p378 = scmp.lt.s32.totalorder %s26, 3
      %p379 = pnand %p377, %p378
      %p380 = pneg %p379
      // Predicated region
      $region45: #{tpu_custom_call.1} parent=5 // pred_check
        _
      $region46: #{tpu_custom_call.1} parent=5 // pred_check_branch
        %382 = sbr.rel (%p379) target = $region48
      $region47: #{tpu_custom_call.1} parent=5 // pred_region
        %s383 = ssub.s32 %s26, 1
        %s384 = sand.u32 %s142, 1
        %s385 = scalar_lea.sflag [#allocation10], %s384
        %s386 = sand.u32 %s142, 1
        %s387 = smul.addr %s386, 128
        %s388 = scalar_lea.vmem [#allocation9], %s387
        // Predicated region
        $region49: #{tpu_custom_call.1} parent=47 // pred_check
          %p389 = pneg %p155
        $region50: #{tpu_custom_call.1} parent=47 // pred_check_branch
          %391 = sbr.rel (%p389) target = $region52
        $region51: #{tpu_custom_call.1} parent=47 // pred_region
          %392 = dma.done %s385, 2048
        $region52: #{tpu_custom_call.1} parent=47 // pred_fallthru
          _
        %p393 = scmp.lt.s32.totalorder %s36, 0
        %s394 = scalar_select %p393, %s36, 0
        %s395 = smul.addr %s394, 8
        %s396 = scalar_lea.vmem %s2, %s395
        %p397 = pneg %p71
        %p398 = pneg %p68
        %p399 = scmp.lt.s32.totalorder %s36, 0
        %s400 = scalar_select %p399, %s36, 0
        %s401 = smul.addr %s400, 8
        %s402 = scalar_lea.vmem %s3, %s401
        %p403 = pneg %p97
        %p404 = pneg %p94
        %p405 = scmp.lt.s32.totalorder %s36, 0
        %s406 = scalar_select %p405, %s36, 0
        %s407 = smul.addr %s406, 8
        %s408 = scalar_lea.vmem %s4, %s407
        %p409 = pneg %p123
        %p410 = pneg %p120
        %s411 = sand.u32 %s142, 1
        %s412 = scalar_lea.sflag [#allocation10], %s411
        %s413 = sand.u32 %s142, 1
        %s414 = smul.addr %s413, 128
        %s415 = scalar_lea.vmem [#allocation9], %s414
        %p416 = pneg %p155
        %p417 = pneg %p152
        %s418 = sadd.s32 %s37, %s36
        %s419 = sadd.s32 %s418, %s38
        %s420 = sld [smem:[#allocation7 + %s419]]
        %p421 = scmp.lt.s32.totalorder %s420, 0
        %s422 = scalar_select %p421, %s420, 0
        %s423 = scalar_lea.vmem %s6, %s422
        %p424 = pneg %p187
        %p425 = pneg %p184
        %s426 = sadd.s32 %s37, %s36
        %s427 = sadd.s32 %s426, %s38
        %s428 = sld [smem:[#allocation7 + %s427]]
        %p429 = scmp.lt.s32.totalorder %s428, 0
        %s430 = scalar_select %p429, %s428, 0
        %s431 = scalar_lea.vmem %s7, %s430
        %p432 = pneg %p219
        %p433 = pneg %p216
        %s434 = sadd.s32 %s37, %s36
        %s435 = sadd.s32 %s434, %s38
        %s436 = sld [smem:[#allocation7 + %s435]]
        %p437 = scmp.lt.s32.totalorder %s436, 0
        %s438 = scalar_select %p437, %s436, 0
        %s439 = scalar_lea.vmem %s8, %s438
        %p440 = pneg %p251
        %p441 = pneg %p248
        %p442 = pneg %p277
        %p443 = pneg %p274
        %p444 = scmp.lt.s32.totalorder %s36, 0
        %s445 = scalar_select %p444, %s36, 0
        %s446 = smul.addr %s445, 8
        %s447 = scalar_lea.vmem %s2, %s446
        %p448 = scmp.lt.s32.totalorder %s36, 0
        %s449 = scalar_select %p448, %s36, 0
        %s450 = smul.addr %s449, 8
        %s451 = scalar_lea.vmem %s3, %s450
        %p452 = scmp.lt.s32.totalorder %s36, 0
        %s453 = scalar_select %p452, %s36, 0
        %s454 = smul.addr %s453, 8
        %s455 = scalar_lea.vmem %s4, %s454
        %s456 = sadd.s32 %s37, %s36
        %s457 = sadd.s32 %s456, %s38
        %s458 = sld [smem:[#allocation7 + %s457]]
        %s459 = smul.u32 16, %s458
        %s460 = sadd.s32 %s37, %s36
        %s461 = sadd.s32 %s460, %s38
        %s462 = sld [smem:[#allocation7 + %s461]]
        %p463 = scmp.lt.s32.totalorder %s462, 0
        %s464 = scalar_select %p463, %s462, 0
        %s465 = scalar_lea.vmem %s6, %s464
        %s466 = sadd.s32 %s37, %s36
        %s467 = sadd.s32 %s466, %s38
        %s468 = sld [smem:[#allocation7 + %s467]]
        %s469 = sadd.s32 %s37, %s36
        %s470 = sadd.s32 %s469, %s38
        %s471 = sld [smem:[#allocation7 + %s470]]
        %p472 = scmp.lt.s32.totalorder %s471, 0
        %s473 = scalar_select %p472, %s471, 0
        %s474 = scalar_lea.vmem %s7, %s473
        %s475 = sadd.s32 %s37, %s36
        %s476 = sadd.s32 %s475, %s38
        %s477 = sld [smem:[#allocation7 + %s476]]
        %s478 = sadd.s32 %s37, %s36
        %s479 = sadd.s32 %s478, %s38
        %s480 = sld [smem:[#allocation7 + %s479]]
        %p481 = scmp.lt.s32.totalorder %s480, 0
        %s482 = scalar_select %p481, %s480, 0
        %s483 = scalar_lea.vmem %s8, %s482
        %s484 = sadd.s32 %s37, %s36
        %s485 = sadd.s32 %s484, %s38
        %s486 = sld [smem:[#allocation7 + %s485]]
        %p487 = scmp.eq.s32.totalorder %s37, 0
        %p488 = scmp.eq.s32.totalorder %s38, 0
        %p489 = pnand %p487, %p488
        %p490 = pneg %p489
        // Predicated region
        $region53: #{tpu_custom_call.1} parent=47 // pred_check
          _
        $region54: #{tpu_custom_call.1} parent=47 // pred_check_branch
          %492 = sbr.rel (%p489) target = $region56
        $region55: #{tpu_custom_call.1} parent=47 // pred_region
          %vm493 = vcmask 7168
          %494 = vst.msk [vmem:[#allocation2] sm:$0xff] %vm493, -1e+30
          %495 = vst.msk [vmem:[#allocation3] sm:$0xff] %vm493, 0.0
          %496 = vst.msk [vmem:[#allocation4] sm:$0xff] %vm493, 0.0
          %497 = vst.msk [vmem:[#allocation5] sm:$0xff] %vm493, 0.0
        $region56: #{tpu_custom_call.1} parent=47 // pred_fallthru
          _
        %s498 = sadd.s32 %s36, %s38
        %s499 = sld [smem:[#allocation8 + %s498]]
        %p500 = scmp.gt.s32.totalorder %s499, 0
        %p501 = por %p487, %p500
        // Predicated region
        $region57: #{tpu_custom_call.1} parent=47 // pred_check
          %p502 = pneg %p501
        $region58: #{tpu_custom_call.1} parent=47 // pred_check_branch
          %504 = sbr.rel (%p502) target = $region60
        $region59: #{tpu_custom_call.1} parent=47 // pred_region
          %v505 = vld [vmem:[%s447] sm:$0xff]
          %v506 = vld [vmem:[%s388] sm:$0xff]
          %v507 = vld [vmem:[%s388 + $0x8] sm:$0xff]
          %v508 = vld [vmem:[%s388 + $0x10] sm:$0xff]
          %v509 = vld [vmem:[%s388 + $0x18] sm:$0xff]
          %v510 = vld [vmem:[%s388 + $0x20] sm:$0xff]
          %v511 = vld [vmem:[%s388 + $0x28] sm:$0xff]
          %v512 = vld [vmem:[%s388 + $0x30] sm:$0xff]
          %v513 = vld [vmem:[%s388 + $0x38] sm:$0xff]
          %v514 = vld [vmem:[%s388 + $0x40] sm:$0xff]
          %v515 = vld [vmem:[%s388 + $0x48] sm:$0xff]
          %v516 = vld [vmem:[%s388 + $0x50] sm:$0xff]
          %v517 = vld [vmem:[%s388 + $0x58] sm:$0xff]
          %v518 = vld [vmem:[%s388 + $0x60] sm:$0xff]
          %v519 = vld [vmem:[%s388 + $0x68] sm:$0xff]
          %v520 = vld [vmem:[%s388 + $0x70] sm:$0xff]
          %v521 = vld [vmem:[%s388 + $0x78] sm:$0xff]
          %v522 = vld [vmem:[%s483] sm:$0x1]
          %v524 = vlaneseq
          %v525 = vshrl.u32 %v524, 7
          %v526 = vsub.s32 0, %v525
          %v527 = vrot.slane %v522, %v526
          %529 = vmatprep.subr.mxu0 0.0
          %530 = vmatpush1.xpose.msra.mxu0 %v506
          %531 = vmatprep.subr.mxu0 0.0
          %532 = vmatpush1.xpose.msra.mxu0 %v507
          %533 = vmatprep.subr.mxu0 0.0
          %534 = vmatpush1.xpose.msra.mxu0 %v508
          %535 = vmatprep.subr.mxu0 0.0
          %536 = vmatpush1.xpose.msra.mxu0 %v509
          %537 = vmatprep.subr.mxu0 0.0
          %538 = vmatpush1.xpose.msra.mxu0 %v510
          %539 = vmatprep.subr.mxu0 0.0
          %540 = vmatpush1.xpose.msra.mxu0 %v511
          %541 = vmatprep.subr.mxu0 0.0
          %542 = vmatpush1.xpose.msra.mxu0 %v512
          %543 = vmatprep.subr.mxu0 0.0
          %544 = vmatpush1.xpose.msra.mxu0 %v513
          %545 = vmatprep.subr.mxu0 0.0
          %546 = vmatpush1.xpose.msra.mxu0 %v514
          %547 = vmatprep.subr.mxu0 0.0
          %548 = vmatpush1.xpose.msra.mxu0 %v515
          %549 = vmatprep.subr.mxu0 0.0
          %550 = vmatpush1.xpose.msra.mxu0 %v516
          %551 = vmatprep.subr.mxu0 0.0
          %552 = vmatpush1.xpose.msra.mxu0 %v517
          %553 = vmatprep.subr.mxu0 0.0
          %554 = vmatpush1.xpose.msra.mxu0 %v518
          %555 = vmatprep.subr.mxu0 0.0
          %556 = vmatpush1.xpose.msra.mxu0 %v519
          %557 = vmatprep.subr.mxu0 0.0
          %558 = vmatpush1.xpose.msra.mxu0 %v520
          %559 = vmatprep.subr.mxu0 0.0
          %560 = vmatpush1.xpose.msra.mxu0 %v521
          %561 = vmatprep.subr.mxu0 0.0
          %562 = vmatpush1.xpose.msra.mxu0 0.0
          %563 = vmatprep.subr.mxu0 0.0
          %564 = vmatpush1.xpose.msra.mxu0 0.0
          %565 = vmatprep.subr.mxu0 0.0
          %566 = vmatpush1.xpose.msra.mxu0 0.0
          %567 = vmatprep.subr.mxu0 0.0
          %568 = vmatpush1.xpose.msra.mxu0 0.0
          %569 = vmatprep.subr.mxu0 0.0
          %570 = vmatpush1.xpose.msra.mxu0 0.0
          %571 = vmatprep.subr.mxu0 0.0
          %572 = vmatpush1.xpose.msra.mxu0 0.0
          %573 = vmatprep.subr.mxu0 0.0
          %574 = vmatpush1.xpose.msra.mxu0 0.0
          %575 = vmatprep.subr.mxu0 0.0
          %576 = vmatpush1.xpose.msra.mxu0 0.0
          %577 = vmatprep.subr.mxu0 0.0
          %578 = vmatpush1.xpose.msra.mxu0 0.0
          %579 = vmatprep.subr.mxu0 0.0
          %580 = vmatpush1.xpose.msra.mxu0 0.0
          %581 = vmatprep.subr.mxu0 0.0
          %582 = vmatpush1.xpose.msra.mxu0 0.0
          %583 = vmatprep.subr.mxu0 0.0
          %584 = vmatpush1.xpose.msra.mxu0 0.0
          %585 = vmatprep.subr.mxu0 0.0
          %586 = vmatpush1.xpose.msra.mxu0 0.0
          %587 = vmatprep.subr.mxu0 0.0
          %588 = vmatpush1.xpose.msra.mxu0 0.0
          %589 = vmatprep.subr.mxu0 0.0
          %590 = vmatpush1.xpose.msra.mxu0 0.0
          %591 = vmatprep.subr.mxu0 0.0
          %592 = vmatpush1.xpose.msra.mxu0 0.0
          %593 = vmatprep.mubr.f32.mxu0 0.0
          %594 = vmatmul.mubr.f32.gmra.mrb[0].mxu0 %v505
          %v595 = vpop.f32.mrb[0].mxu0
          %v596 = vadd.f32 %v527, %v595
          %v597 = vpop.f32.mrb[0].mxu0
          %598 = vdwg.mxu0
          %v599 = vld [vmem:[%s451] sm:$0xff]
          %v600 = vld [vmem:[%s474] sm:$0x1]
          %601 = vset.pattern.permute.xlu0 0
          %602 = vperm.xlu0 %601, %v599
          %v603 = vpop.permute.xlu0 %602
          %v604 = vlaneseq
          %v605 = vshrl.u32 %v604, 7
          %v606 = vsub.s32 0, %v605
          %v607 = vrot.slane %v600, %v606
          %vm608 = vcmp.ne.s32.totalorder %v603, %v607
          %v609 = vld [vmem:[%s455] sm:$0xff]
          %v610 = vld [vmem:[%s465] sm:$0x1]
          %611 = vset.pattern.permute.xlu0 0
          %612 = vperm.xlu0 %611, %v609
          %v613 = vpop.permute.xlu0 %612
          %v614 = vlaneseq
          %v615 = vshrl.u32 %v614, 7
          %v616 = vsub.s32 0, %v615
          %v617 = vrot.slane %v610, %v616
          %vm618 = vcmp.eq.s32.totalorder %v613, %v617
          %vm619 = vmand %vm618, %vm608
          // Predicated region
          $region61: #{tpu_custom_call.1} parent=59 // pred_check
            %p620 = pneg %p487
          $region62: #{tpu_custom_call.1} parent=59 // pred_check_branch
            %622 = sbr.rel (%p620) target = $region64
          $region63: #{tpu_custom_call.1} parent=59 // pred_region
            %v623 = vld [vmem:[#allocation2] sm:$0xff]
            %624 = vmax.xlane.f32.xlu0 %v596
            %v625 = vpop.xlane.xlu0 %624
            %v626 = vmax.f32 %v623, %v625
            %628 = vset.pattern.permute.xlu0 0
            %629 = vperm.xlu0 %628, %v626
            %v630 = vpop.permute.xlu0 %629
            %v632 = vsub.f32 %v596, %v630
            %v633 = vmul.f32 %v632, 1.442695
            %v634 = vpow.pop %v633
            %vm635 = vmxor %vm619, 1
            %vm636 = vmand %vm608, %vm635
            %v637 = vsub.f32 %v623, %v626
            %v638 = vmul.f32 %v637, 1.442695
            %v639 = vpow.pop %v638
            %v640 = vld [vmem:[#allocation3] sm:$0xff]
            %v641 = vmul.f32 %v639, %v640
            %v642 = vsel %vm636, %v634, 0.0
            %643 = vadd.xlane.f32.xlu0 %v642
            %v644 = vpop.xlane.xlu0 %643
            %v645 = vadd.f32 %v641, %v644
            %vm646 = vcmask 7168
            %647 = vst.msk [vmem:[#allocation3] sm:$0xff] %vm646, %v645
            %648 = vst.msk [vmem:[#allocation2] sm:$0xff] %vm646, %v626
          $region64: #{tpu_custom_call.1} parent=59 // pred_fallthru
            _
          %p649 = scmp.eq.s32.totalorder %s37, 1
          // Predicated region
          $region65: #{tpu_custom_call.1} parent=59 // pred_check
            %p650 = pneg %p649
          $region66: #{tpu_custom_call.1} parent=59 // pred_check_branch
            %652 = sbr.rel (%p650) target = $region68
          $region67: #{tpu_custom_call.1} parent=59 // pred_region
            %v653 = vld [vmem:[#allocation2] sm:$0xff]
            %655 = vset.pattern.permute.xlu0 0
            %656 = vperm.xlu0 %655, %v653
            %v657 = vpop.permute.xlu0 %656
            %v659 = vsub.f32 %v596, %v657
            %v660 = vmul.f32 %v659, 1.442695
            %v661 = vpow.pop %v660
            %v662 = vld [vmem:[#allocation3] sm:$0xff]
            %664 = vset.pattern.permute.xlu0 0
            %665 = vperm.xlu0 %664, %v662
            %v666 = vpop.permute.xlu0 %665
            %v668 = vadd.f32 %v661, %v666
            %v669 = vadd.f32 %v668, 1e-06
            %v670 = vlog2.pop %v669
            %v671 = vmul.f32 %v670, 0.6931472
            %v672 = vld [vmem:[#allocation4] sm:$0xff]
            %v673 = vsub.f32 %v659, %v671
            %v674 = vsel %vm619, %v673, 0.0
            %675 = vadd.xlane.f32.xlu0 %v674
            %v676 = vpop.xlane.xlu0 %675
            %v677 = vadd.f32 %v672, %v676
            %vm678 = vcmask 7168
            %679 = vst.msk [vmem:[#allocation4] sm:$0xff] %vm678, %v677
            %v680 = vld [vmem:[#allocation5] sm:$0xff]
            %v681 = vsel %vm619, 1.0, 0.0
            %682 = vadd.xlane.f32.xlu0 %v681
            %v683 = vpop.xlane.xlu0 %682
            %v684 = vadd.f32 %v680, %v683
            %685 = vst.msk [vmem:[#allocation5] sm:$0xff] %vm678, %v684
          $region68: #{tpu_custom_call.1} parent=59 // pred_fallthru
            _
        $region60: #{tpu_custom_call.1} parent=47 // pred_fallthru
          _
        %p686 = scmp.eq.s32.totalorder %s37, 1
        %p687 = pnand %p686, %p488
        %p688 = pneg %p687
        // Predicated region
        $region69: #{tpu_custom_call.1} parent=47 // pred_check
          _
        $region70: #{tpu_custom_call.1} parent=47 // pred_check_branch
          %690 = sbr.rel (%p687) target = $region72
        $region71: #{tpu_custom_call.1} parent=47 // pred_region
          %v691 = vld [vmem:[#allocation5] sm:$0xff]
          %v692 = vmax.f32 %v691, 1.0
          %v693 = vld [vmem:[#allocation4] sm:$0xff]
          %v694 = vrcp.pop %v692
          %v695 = vmul.f32 %v693, %v694
          %697 = vset.pattern.permute.xlu0 0
          %698 = vperm.xlu0 %697, %v695
          %v699 = vpop.permute.xlu0 %698
          %701 = vst [vmem:[#allocation12] sm:$0xff] %v699
        $region72: #{tpu_custom_call.1} parent=47 // pred_fallthru
          _
        // Predicated region
        $region73: #{tpu_custom_call.1} parent=47 // pred_check
          %p702 = pneg %p274
        $region74: #{tpu_custom_call.1} parent=47 // pred_check_branch
          %704 = sbr.rel (%p702) target = $region76
        $region75: #{tpu_custom_call.1} parent=47 // pred_region
          %s706 = ssub.s32 128, 128
          %707 = vsyncadd [#allocation11], %s706
          %s708 = smul.addr %s36, 128
          %s709 = scalar_lea.hbm %s9, %s708
          %s711 = sshll.u32 [#allocation12], 4
          %s712 = int_to_ptr.vmem [resolvable:$true] %s711
          %714 = dma.vmem_to_hbm [thread:$0]  %s712, 128, %s709, [#allocation11]
        $region76: #{tpu_custom_call.1} parent=47 // pred_fallthru
          _
        // Predicated region
        $region77: #{tpu_custom_call.1} parent=47 // pred_check
          %p715 = pneg %p274
        $region78: #{tpu_custom_call.1} parent=47 // pred_check_branch
          %717 = sbr.rel (%p715) target = $region80
        $region79: #{tpu_custom_call.1} parent=47 // pred_region
          %718 = dma.done [#allocation11], 128
        $region80: #{tpu_custom_call.1} parent=47 // pred_fallthru
          _
      $region48: #{tpu_custom_call.1} parent=5 // pred_fallthru
        _
      %p719 = scmp.le.s32.totalorder 2, %s26
      // Predicated region
      $region81: #{tpu_custom_call.1} parent=5 // pred_check
        %p720 = pneg %p719
      $region82: #{tpu_custom_call.1} parent=5 // pred_check_branch
        %722 = sbr.rel (%p720) target = $region84
      $region83: #{tpu_custom_call.1} parent=5 // pred_region
        %s723 = ssub.s32 %s26, 2
      $region84: #{tpu_custom_call.1} parent=5 // pred_fallthru
        _
    $region6: #{tpu_custom_call.1} parent=1 // loop_footer
      %s30 = sadd.s32 1, %s26
    $region7: #{tpu_custom_call.1} parent=1 // loop_footer_branch
      %25 = sbr.rel target = $region3
    $region8: #{tpu_custom_call.1} parent=1 // loop_exit
      _
    %724 = vsyncpa [#allocation10], 1
    %s725 = scalar_lea.sflag [#allocation10], 1
    %726 = vsyncpa %s725, 1
    %727 = vsyncpa [#allocation11], 1
    %s728 = scalar_lea.sflag [#allocation11], 1
    %729 = vsyncpa %s728, 1

</llo_original>
